<compile_context>
chip_gen: v7x
topology: tpu7x:2x2x1
jax: 0.10.0
libtpu: 0.0.40
codegen_flags: <defaults>
</compile_context>

<pallas_src>
import jax
import jax.numpy as jnp
from jax.experimental import pallas as pl
from jax.experimental.pallas import tpu as pltpu


def _cross_attn_kernel(x1_ref, x2_ref, w_ref, b_ref, o_ref):
    # x1_ref / o_ref: (B, C, T); x2_ref: (B, 1, T); w_ref / b_ref: (1, C, 1) f32.
    x2 = x2_ref[...].astype(jnp.float32)                       # (B, 1, T)
    attn = jax.nn.sigmoid(w_ref[...] * x2 + b_ref[...])        # (B, C, T) f32; sigmoid -> EUP
    o_ref[...] = x1_ref[...] * attn.astype(o_ref.dtype)        # gate multiply in native dtype


def cross_attention_conv(x1, x2, weight, bias, *, target_step_bytes=4 << 20):
    """x1: (N, C, D, H, W); x2: (N, 1, D, H, W); weight: (C,1,1,1,1); bias: (C,)."""
    N, C, D, H, W = x1.shape
    S = D * H * W
    it1 = jnp.dtype(x1.dtype).itemsize
    it2 = jnp.dtype(x2.dtype).itemsize

    x1f = x1.reshape(N, C, S)
    x2f = x2.reshape(N, 1, S)
    w3d = weight.reshape(1, C, 1).astype(jnp.float32)
    b3d = bias.reshape(1, C, 1).astype(jnp.float32)

    def rup(x, m):
        return ((x + m - 1) // m) * m

    # ---- device-aware VMEM budget -------------------------------------------
    try:
        vmem_cap = int(pltpu.get_tpu_info().vmem_capacity_bytes)
    except Exception:
        vmem_cap = 64 * 1024 * 1024                  # conservative fallback (v7x-sized)
    budget = int(0.6 * vmem_cap)

    sub1 = 8 * max(1, 4 // it1)                      # sublane rows per native tile (f32:8, bf16:16)
    sub2 = 8 * max(1, 4 // it2)

    def vmem_bytes(bt, ts):
        # Padded VMEM footprint: x1 + out + x2 double-buffered; w/b small but double-buffered.
        tpad = rup(ts, 128)
        x1o = 2 * 2 * bt * rup(C, sub1) * tpad * it1
        x2b = 2 * bt * sub2 * tpad * it2             # channel-1 slab still occupies sub2 rows
        wb = 2 * 2 * rup(C, 8) * 128 * 4
        return x1o + x2b + wb

    def step_bytes(bt, ts):
        # Raw HBM bytes moved per grid step (x1 read + out write + x2 read).
        return bt * (2 * C * it1 + it2) * ts

    # ---- lane tile: big enough to hit the bytes-per-step target -------------
    per_lane = 2 * C * it1 + it2
    want_ts = max(128, -(-target_step_bytes // per_lane))      # ceil div
    want_ts = min(want_ts, 32768)                              # hard cap on lane-tile width
    if S <= want_ts:
        tile_s = S                                   # block == full dim: always layout-legal
    else:
        tile_s = min(rup(want_ts, 128), (S // 128) * 128)      # multiple of 128, <= S
        while tile_s > 128 and vmem_bytes(1, tile_s) > budget:
            tile_s = max(128, (tile_s // 256) * 128)           # halve, keep multiple of 128
    n_s = pl.cdiv(S, tile_s)                         # last block may be partial -> masked store

    # ---- batch tile: divisor of N, fold batches toward the byte target ------
    b_tile = 1
    for d in range(1, N + 1):
        if N % d:
            continue
        steps = (N // d) * n_s
        if steps < min(4, N * n_s):                  # keep >= 4 grid steps when possible
            break
        if vmem_bytes(d, tile_s) > budget:
            break
        b_tile = d
        if step_bytes(d, tile_s) >= target_step_bytes:
            break

    grid = (N // b_tile, n_s)
    est = vmem_bytes(b_tile, tile_s)
    vmem_limit = int(min(max(2 * est, 32 * 1024 * 1024), int(0.85 * vmem_cap)))

    cost = pl.CostEstimate(
        flops=int(3 * N * C * S),                    # w*x2 + b, then gate multiply
        transcendentals=int(N * C * S),              # sigmoid
        bytes_accessed=int(N * S * (2 * C * it1 + it2) + 2 * C * 4),
    )

    out = pl.pallas_call(
        _cross_attn_kernel,
        out_shape=jax.ShapeDtypeStruct((N, C, S), x1.dtype),
        grid_spec=pltpu.PrefetchScalarGridSpec(
            num_scalar_prefetch=0,
            grid=grid,
            in_specs=[
                pl.BlockSpec((b_tile, C, tile_s), lambda n, s: (n, 0, s)),
                pl.BlockSpec((b_tile, 1, tile_s), lambda n, s: (n, 0, s)),
                pl.BlockSpec((1, C, 1), lambda n, s: (0, 0, 0)),
                pl.BlockSpec((1, C, 1), lambda n, s: (0, 0, 0)),
            ],
            out_specs=pl.BlockSpec((b_tile, C, tile_s), lambda n, s: (n, 0, s)),
        ),
        compiler_params=pltpu.CompilerParams(
            dimension_semantics=("parallel", "parallel"),
            vmem_limit_bytes=vmem_limit,
        ),
        cost_estimate=cost,
    )(x1f, x2f, w3d, b3d)

    return out.reshape(N, C, D, H, W)


if __name__ == "__main__":
    key = jax.random.PRNGKey(0)
    k1, k2, kw, kb = jax.random.split(key, 4)

    def run_case(N, C, D, H, W, target_step_bytes=4 << 20):
        kk1 = jax.random.fold_in(k1, N * C * D * H * W)
        kk2 = jax.random.fold_in(k2, N * C * D * H * W)
        x1 = jax.random.normal(kk1, (N, C, D, H, W), dtype=jnp.float32)
        x2 = jax.random.normal(kk2, (N, 1, D, H, W), dtype=jnp.float32)
        # Deterministic Conv3d(1, C, kernel_size=1) params (synthetic init).
        weight = jax.random.normal(kw, (C, 1, 1, 1, 1), dtype=jnp.float32) * 0.1
        bias = jax.random.normal(kb, (C,), dtype=jnp.float32) * 0.1

        out = jax.block_until_ready(
            cross_attention_conv(x1, x2, weight, bias,
                                 target_step_bytes=target_step_bytes))

        attn_ref = jax.nn.sigmoid(weight.reshape(1, C, 1, 1, 1) * x2 +
                                  bias.reshape(1, C, 1, 1, 1))
        ref = x1 * attn_ref
        assert out.shape == ref.shape
        assert jnp.allclose(out, ref, atol=1e-5, rtol=1e-5), \
            f"mismatch vs reference for shape {(N, C, D, H, W)}"

    run_case(2, 4, 4, 8, 8)                            # S=256: aligned, single lane-tile
    run_case(2, 4, 3, 7, 5)                            # S=105: full-dim (unaligned) single tile
    run_case(2, 4, 3, 7, 13, target_step_bytes=4096)   # S=273, tile_s=128: masked final tile
    run_case(8, 2, 2, 8, 8)                            # S=128, N=8: batch folding (b_tile=2)
    print("KERNEL_OK")
</pallas_src>

<mosaic_0001>
module attributes {stable_mosaic.version = 11 : i64} {
  func.func @_cross_attn_kernel(%arg0: i32, %arg1: i32, %arg2: memref<1x4x256xf32, #tpu.memory_space<vmem>>, %arg3: memref<1x1x256xf32, #tpu.memory_space<vmem>>, %arg4: memref<1x4x1xf32, #tpu.memory_space<vmem>>, %arg5: memref<1x4x1xf32, #tpu.memory_space<vmem>>, %arg6: memref<1x4x256xf32, #tpu.memory_space<vmem>>) attributes {dimension_semantics = [#tpu.dimension_semantics<parallel>, #tpu.dimension_semantics<parallel>], iteration_bounds = array<i64: 2, 1>, scalar_prefetch = 0 : i64, scratch_operands = 0 : i64, tpu.core_type = #tpu.core_type<tc>, window_params = [{transform_indices = @transform_0, window_bounds = array<i64: 1, 4, 256>}, {transform_indices = @transform_1, window_bounds = array<i64: 1, 1, 256>}, {pipeline_mode = #tpu.pipeline_mode<synchronous>, transform_indices = @transform_2, window_bounds = array<i64: 1, 4, 1>}, {pipeline_mode = #tpu.pipeline_mode<synchronous>, transform_indices = @transform_3, window_bounds = array<i64: 1, 4, 1>}, {transform_indices = @transform_4, window_bounds = array<i64: 1, 4, 256>}]} {
    %c0 = arith.constant 0 : index
    %c0_0 = arith.constant 0 : index
    %c0_1 = arith.constant 0 : index
    %0 = vector.load %arg3[%c0, %c0_0, %c0_1] : memref<1x1x256xf32, #tpu.memory_space<vmem>>, vector<1x1x256xf32>
    %c0_2 = arith.constant 0 : index
    %c0_3 = arith.constant 0 : index
    %c0_4 = arith.constant 0 : index
    %1 = vector.load %arg4[%c0_2, %c0_3, %c0_4] : memref<1x4x1xf32, #tpu.memory_space<vmem>>, vector<1x4x1xf32>
    %2 = vector.broadcast %1 : vector<1x4x1xf32> to vector<1x4x256xf32>
    %3 = vector.broadcast %0 : vector<1x1x256xf32> to vector<1x4x256xf32>
    %4 = arith.mulf %2, %3 : vector<1x4x256xf32>
    %c0_5 = arith.constant 0 : index
    %c0_6 = arith.constant 0 : index
    %c0_7 = arith.constant 0 : index
    %5 = vector.load %arg5[%c0_5, %c0_6, %c0_7] : memref<1x4x1xf32, #tpu.memory_space<vmem>>, vector<1x4x1xf32>
    %6 = vector.broadcast %5 : vector<1x4x1xf32> to vector<1x4x256xf32>
    %7 = arith.addf %4, %6 : vector<1x4x256xf32>
    %8 = arith.negf %7 : vector<1x4x256xf32>
    %9 = math.exp %8 : vector<1x4x256xf32>
    %cst = arith.constant 1.000000e+00 : f32
    %10 = vector.broadcast %cst : f32 to vector<1x4x256xf32>
    %11 = arith.addf %10, %9 : vector<1x4x256xf32>
    %12 = arith.divf %10, %11 : vector<1x4x256xf32>
    %c0_8 = arith.constant 0 : index
    %c0_9 = arith.constant 0 : index
    %c0_10 = arith.constant 0 : index
    %13 = vector.load %arg2[%c0_8, %c0_9, %c0_10] : memref<1x4x256xf32, #tpu.memory_space<vmem>>, vector<1x4x256xf32>
    %14 = arith.mulf %13, %12 : vector<1x4x256xf32>
    %c0_11 = arith.constant 0 : index
    %c0_12 = arith.constant 0 : index
    %c0_13 = arith.constant 0 : index
    %15 = vector.load %arg6[%c0_11, %c0_12, %c0_13] : memref<1x4x256xf32, #tpu.memory_space<vmem>>, vector<1x4x256xf32>
    tpu.vector_store %arg6[%c0_11, %c0_12, %c0_13], %14 {strides = array<i32>} : memref<1x4x256xf32, #tpu.memory_space<vmem>>, vector<1x4x256xf32>,
    return
  }
  func.func @transform_0(%arg0: i32, %arg1: i32) -> (i32, i32, i32) {
    %c0_i32 = arith.constant 0 : i32
    %c0_i32_0 = arith.constant 0 : i32
    return %arg0, %c0_i32, %arg1 : i32, i32, i32
  }
  func.func @transform_1(%arg0: i32, %arg1: i32) -> (i32, i32, i32) {
    %c0_i32 = arith.constant 0 : i32
    %c0_i32_0 = arith.constant 0 : i32
    return %arg0, %c0_i32, %arg1 : i32, i32, i32
  }
  func.func @transform_2(%arg0: i32, %arg1: i32) -> (i32, i32, i32) {
    %c0_i32 = arith.constant 0 : i32
    %c0_i32_0 = arith.constant 0 : i32
    %c0_i32_1 = arith.constant 0 : i32
    %c0_i32_2 = arith.constant 0 : i32
    return %c0_i32, %c0_i32_0, %c0_i32_1 : i32, i32, i32
  }
  func.func @transform_3(%arg0: i32, %arg1: i32) -> (i32, i32, i32) {
    %c0_i32 = arith.constant 0 : i32
    %c0_i32_0 = arith.constant 0 : i32
    %c0_i32_1 = arith.constant 0 : i32
    %c0_i32_2 = arith.constant 0 : i32
    return %c0_i32, %c0_i32_0, %c0_i32_1 : i32, i32, i32
  }
  func.func @transform_4(%arg0: i32, %arg1: i32) -> (i32, i32, i32) {
    %c0_i32 = arith.constant 0 : i32
    %c0_i32_0 = arith.constant 0 : i32
    return %arg0, %c0_i32, %arg1 : i32, i32, i32
  }
}

</mosaic_0001>

<llo_original>
// kernel: tpu_custom_call.1
$region0: #{tpu_custom_call.1}
  #allocation0 [shape = 'u32[]', space=smem, size = 0x4, offset = 0x4, fixed_abs, tag = 'smem constant byte address 0x4 - core index']
  #allocation1 [shape = 'u32[144,128]{1,0:T(1,128)}', space=vmem, size = 0x12000, scoped, tag = 'internal scratch']
  %s0 = inlined_call_operand.hbm [shape: f32[2,4,256], index: 0, kind: input, shape index: {}]
  %s1 = inlined_call_operand.vmem [shape: f32[2,1,256], index: 1, kind: input, shape index: {}]
  %s2 = inlined_call_operand.vmem [shape: f32[1,4,1], index: 2, kind: input, shape index: {}]
  %s3 = inlined_call_operand.vmem [shape: f32[1,4,1], index: 3, kind: input, shape index: {}]
  %s4 = inlined_call_operand.hbm [shape: f32[2,4,256], index: 4, kind: output, shape index: {}]
  %s5 = sld [smem:[#allocation0]]
  $region53: #{tpu_custom_call.1} parent=0
    _
  %s7 = ssub.s32 1, %s5
  %s8 = scalar_select 0, %s7, %s5
  $region1: #{tpu_custom_call.1} parent=0
    #allocation2 [shape = 'u8[8192]{0}', space=vmem, size = 0x2000, scoped, tag = 'input window, operand 0']
    #allocation3 [shape = 's32[2]{0}', space=sflag, size = 0x8, scoped, tag = 'scoped memory for tpu_custom_call.1']
    #allocation4 [shape = 's32[2]{0}', space=sflag, size = 0x8, scoped, tag = 'scoped memory for tpu_custom_call.1']
    #allocation5 [shape = 'u8[8192]{0}', space=vmem, size = 0x2000, scoped, tag = 'output window, operand 0']
    %9 = vsyncpa [#allocation3], 0
    %s10 = scalar_lea.sflag [#allocation3], 1
    %11 = vsyncpa %s10, 0
    %12 = vsyncpa [#allocation4], 0
    %s13 = scalar_lea.sflag [#allocation4], 1
    %14 = vsyncpa %s13, 0
    loop: start=0, step=1, limit=4
    $region2: #{tpu_custom_call.1} parent=1 // loop_pre_header
      _
    $region3: #{tpu_custom_call.1} parent=1 // loop_header
      %s16 = sphi 0, %s20
      %p17 = scmp.ge.s32.totalorder %s16, 4
      %s23 = sphi 0, %s35
      %s24 = sphi 0, %s31
      %s25 = sphi 0, %s23
      %s26 = sphi 0, %s24
      %s27 = sphi 0, %s25
      %s28 = sphi 0, %s26
      %s40 = sphi 0, %s42
      %s43 = sphi 0, %s40
      %s44 = sphi 0, %s43
      %s60 = sphi 0, %s44
      %s68 = sphi 0, %s70
      %s71 = sphi 0, %s68
      %s72 = sphi 0, %s71
      %s88 = sphi 0, %s72
      %s92 = sphi 0, %s92
      %s94 = sphi 0, %s92
      %s95 = sphi 0, %s94
      %s109 = sphi 0, %s95
      %s113 = sphi 0, %s113
      %s115 = sphi 0, %s113
      %s116 = sphi 0, %s115
      %s130 = sphi 0, %s116
      %s138 = sphi 0, %s140
      %s141 = sphi 0, %s138
      %s142 = sphi 0, %s141
      %s158 = sphi 0, %s142
    $region4: #{tpu_custom_call.1} parent=1 // loop_header_branch
      %19 = sbr.rel (%p17) target = $region8
    $region5: #{tpu_custom_call.1} parent=1 // loop_body
      %s21 = ssub.s32 %s16, 1
      %s22 = ssub.s32 %s16, 2
      %s29 = sadd.s32 1, %s24
      %p30 = scmp.ge.s32.totalorder %s29, 1
      %s31 = scalar_select %p30, 0, %s29
      %s32 = sadd.s32 1, %s23
      %s33 = scalar_select %p30, %s32, %s23
      %p34 = scmp.ge.s32.totalorder %s33, 2
      %s35 = scalar_select %p34, 0, %s33
      %s36 = ssub.s32 %s23, %s35
      %s37 = ssub.s32 %s24, %s31
      %s38 = sor.u32 %s36, %s37
      %p39 = scmp.eq.s32.totalorder %s38, 0
      %s41 = sadd.s32 %s40, 1
      %s42 = scalar_select %p39, %s40, %s41
      %p45 = pneg %p39
      %p46 = scmp.eq.s32.totalorder %s16, 1
      %p47 = por %p45, %p46
      %p48 = scmp.ne.s32.totalorder %s40, %s43
      %p49 = scmp.eq.s32.totalorder %s16, 0
      %p50 = por %p48, %p49
      %p51 = scmp.ne.s32.totalorder %s40, %s43
      %p52 = scmp.eq.s32.totalorder %s21, 1
      %p53 = por %p51, %p52
      %p54 = scmp.ne.s32.totalorder %s43, %s44
      %p55 = scmp.eq.s32.totalorder %s21, 0
      %p56 = por %p54, %p55
      %p57 = scmp.ne.s32.totalorder %s43, %s44
      %p58 = scmp.eq.s32.totalorder %s22, 1
      %p59 = por %p57, %p58
      %p61 = scmp.ne.s32.totalorder %s44, %s60
      %p62 = scmp.eq.s32.totalorder %s22, 0
      %p63 = por %p61, %p62
      %s64 = ssub.s32 %s23, %s35
      %s65 = ssub.s32 %s24, %s31
      %s66 = sor.u32 %s64, %s65
      %p67 = scmp.eq.s32.totalorder %s66, 0
      %s69 = sadd.s32 %s68, 1
      %s70 = scalar_select %p67, %s68, %s69
      %p73 = pneg %p67
      %p74 = scmp.eq.s32.totalorder %s16, 1
      %p75 = por %p73, %p74
      %p76 = scmp.ne.s32.totalorder %s68, %s71
      %p77 = scmp.eq.s32.totalorder %s16, 0
      %p78 = por %p76, %p77
      %p79 = scmp.ne.s32.totalorder %s68, %s71
      %p80 = scmp.eq.s32.totalorder %s21, 1
      %p81 = por %p79, %p80
      %p82 = scmp.ne.s32.totalorder %s71, %s72
      %p83 = scmp.eq.s32.totalorder %s21, 0
      %p84 = por %p82, %p83
      %p85 = scmp.ne.s32.totalorder %s71, %s72
      %p86 = scmp.eq.s32.totalorder %s22, 1
      %p87 = por %p85, %p86
      %p89 = scmp.ne.s32.totalorder %s72, %s88
      %p90 = scmp.eq.s32.totalorder %s22, 0
      %p91 = por %p89, %p90
      %s93 = sadd.s32 %s92, 1
      %p96 = scmp.eq.s32.totalorder %s16, 1
      %p97 = scmp.ne.s32.totalorder %s92, %s94
      %p98 = scmp.eq.s32.totalorder %s16, 0
      %p99 = por %p97, %p98
      %p100 = scmp.ne.s32.totalorder %s92, %s94
      %p101 = scmp.eq.s32.totalorder %s21, 1
      %p102 = por %p100, %p101
      %p103 = scmp.ne.s32.totalorder %s94, %s95
      %p104 = scmp.eq.s32.totalorder %s21, 0
      %p105 = por %p103, %p104
      %p106 = scmp.ne.s32.totalorder %s94, %s95
      %p107 = scmp.eq.s32.totalorder %s22, 1
      %p108 = por %p106, %p107
      %p110 = scmp.ne.s32.totalorder %s95, %s109
      %p111 = scmp.eq.s32.totalorder %s22, 0
      %p112 = por %p110, %p111
      %s114 = sadd.s32 %s113, 1
      %p117 = scmp.eq.s32.totalorder %s16, 1
      %p118 = scmp.ne.s32.totalorder %s113, %s115
      %p119 = scmp.eq.s32.totalorder %s16, 0
      %p120 = por %p118, %p119
      %p121 = scmp.ne.s32.totalorder %s113, %s115
      %p122 = scmp.eq.s32.totalorder %s21, 1
      %p123 = por %p121, %p122
      %p124 = scmp.ne.s32.totalorder %s115, %s116
      %p125 = scmp.eq.s32.totalorder %s21, 0
      %p126 = por %p124, %p125
      %p127 = scmp.ne.s32.totalorder %s115, %s116
      %p128 = scmp.eq.s32.totalorder %s22, 1
      %p129 = por %p127, %p128
      %p131 = scmp.ne.s32.totalorder %s116, %s130
      %p132 = scmp.eq.s32.totalorder %s22, 0
      %p133 = por %p131, %p132
      %s134 = ssub.s32 %s23, %s35
      %s135 = ssub.s32 %s24, %s31
      %s136 = sor.u32 %s134, %s135
      %p137 = scmp.eq.s32.totalorder %s136, 0
      %s139 = sadd.s32 %s138, 1
      %s140 = scalar_select %p137, %s138, %s139
      %p143 = pneg %p137
      %p144 = scmp.eq.s32.totalorder %s16, 1
      %p145 = por %p143, %p144
      %p146 = scmp.ne.s32.totalorder %s138, %s141
      %p147 = scmp.eq.s32.totalorder %s16, 0
      %p148 = por %p146, %p147
      %p149 = scmp.ne.s32.totalorder %s138, %s141
      %p150 = scmp.eq.s32.totalorder %s21, 1
      %p151 = por %p149, %p150
      %p152 = scmp.ne.s32.totalorder %s141, %s142
      %p153 = scmp.eq.s32.totalorder %s21, 0
      %p154 = por %p152, %p153
      %p155 = scmp.ne.s32.totalorder %s141, %s142
      %p156 = scmp.eq.s32.totalorder %s22, 1
      %p157 = por %p155, %p156
      %p159 = scmp.ne.s32.totalorder %s142, %s158
      %p160 = scmp.eq.s32.totalorder %s22, 0
      %p161 = por %p159, %p160
      %p162 = scmp.le.s32.totalorder 1, %s16
      %p163 = scmp.lt.s32.totalorder %s16, 3
      %p164 = pnand %p162, %p163
      %p165 = pneg %p164
      // Predicated region
      $region9: #{tpu_custom_call.1} parent=5 // pred_check
        _
      $region10: #{tpu_custom_call.1} parent=5 // pred_check_branch
        %167 = sbr.rel (%p164) target = $region12
      $region11: #{tpu_custom_call.1} parent=5 // pred_region
        %s168 = ssub.s32 %s16, 1
        // Predicated region
        $region13: #{tpu_custom_call.1} parent=11 // pred_check
          %p169 = pneg %p105
        $region14: #{tpu_custom_call.1} parent=11 // pred_check_branch
          %171 = sbr.rel (%p169) target = $region16
        $region15: #{tpu_custom_call.1} parent=11 // pred_region
          _
        $region16: #{tpu_custom_call.1} parent=11 // pred_fallthru
          _
        // Predicated region
        $region17: #{tpu_custom_call.1} parent=11 // pred_check
          %p172 = pneg %p126
        $region18: #{tpu_custom_call.1} parent=11 // pred_check_branch
          %174 = sbr.rel (%p172) target = $region20
        $region19: #{tpu_custom_call.1} parent=11 // pred_region
          _
        $region20: #{tpu_custom_call.1} parent=11 // pred_fallthru
          _
      $region12: #{tpu_custom_call.1} parent=5 // pred_fallthru
        _
      %p175 = scmp.lt.s32.totalorder %s16, 2
      // Predicated region
      $region21: #{tpu_custom_call.1} parent=5 // pred_check
        %p176 = pneg %p175
      $region22: #{tpu_custom_call.1} parent=5 // pred_check_branch
        %178 = sbr.rel (%p176) target = $region24
      $region23: #{tpu_custom_call.1} parent=5 // pred_region
        // Predicated region
        $region25: #{tpu_custom_call.1} parent=23 // pred_check
          %p179 = pneg %p50
        $region26: #{tpu_custom_call.1} parent=23 // pred_check_branch
          %181 = sbr.rel (%p179) target = $region28
        $region27: #{tpu_custom_call.1} parent=23 // pred_region
          %s182 = sand.u32 %s40, 1
          %s183 = scalar_lea.sflag [#allocation3], %s182
          %s184 = sand.u32 %s40, 1
          %s185 = smul.addr %s184, 8
          %s186 = scalar_lea.vmem [#allocation2], %s185
          %s187 = smul.u32 2, %s24
          %s189 = ssub.s32 128, 128
          %190 = vsyncadd %s183, %s189
          %s191 = smul.addr %s23, 2
          %s192 = sadd.s32 %s187, %s191
          %s193 = smul.addr %s192, 64
          %s194 = scalar_lea.hbm %s0, %s193
          %s196 = sshll.u32 %s186, 4
          %s197 = int_to_ptr.vmem [resolvable:$true] %s196
          %199 = dma.hbm_to_vmem [thread:$0]  %s194, 128, %s197, %s183
        $region28: #{tpu_custom_call.1} parent=23 // pred_fallthru
          _
        // Predicated region
        $region29: #{tpu_custom_call.1} parent=23 // pred_check
          %p200 = pneg %p78
        $region30: #{tpu_custom_call.1} parent=23 // pred_check_branch
          %202 = sbr.rel (%p200) target = $region32
        $region31: #{tpu_custom_call.1} parent=23 // pred_region
          %s203 = smul.u32 2, %s24
          %p204 = scmp.lt.s32.totalorder %s23, 1
          %s205 = scalar_select %p204, %s23, 1
          %p206 = scmp.lt.s32.totalorder %s203, 1
          %s207 = scalar_select %p206, %s203, 1
          %s208 = smul.addr %s205, 2
          %s209 = sadd.s32 %s207, %s208
          %s210 = scalar_lea.vmem %s1, %s209
          %s211 = smul.u32 2, %s24
        $region32: #{tpu_custom_call.1} parent=23 // pred_fallthru
          _
      $region24: #{tpu_custom_call.1} parent=5 // pred_fallthru
        _
      %p212 = scmp.le.s32.totalorder 1, %s16
      %p213 = scmp.lt.s32.totalorder %s16, 3
      %p214 = pnand %p212, %p213
      %p215 = pneg %p214
      // Predicated region
      $region33: #{tpu_custom_call.1} parent=5 // pred_check
        _
      $region34: #{tpu_custom_call.1} parent=5 // pred_check_branch
        %217 = sbr.rel (%p214) target = $region36
      $region35: #{tpu_custom_call.1} parent=5 // pred_region
        %s218 = ssub.s32 %s16, 1
        %s219 = sand.u32 %s43, 1
        %s220 = scalar_lea.sflag [#allocation3], %s219
        %s221 = sand.u32 %s43, 1
        %s222 = smul.addr %s221, 8
        %s223 = scalar_lea.vmem [#allocation2], %s222
        // Predicated region
        $region37: #{tpu_custom_call.1} parent=35 // pred_check
          %p224 = pneg %p56
        $region38: #{tpu_custom_call.1} parent=35 // pred_check_branch
          %226 = sbr.rel (%p224) target = $region40
        $region39: #{tpu_custom_call.1} parent=35 // pred_region
          %227 = dma.done %s220, 128
        $region40: #{tpu_custom_call.1} parent=35 // pred_fallthru
          _
        %s228 = sand.u32 %s43, 1
        %s229 = scalar_lea.sflag [#allocation3], %s228
        %s230 = sand.u32 %s43, 1
        %s231 = smul.addr %s230, 8
        %s232 = scalar_lea.vmem [#allocation2], %s231
        %p233 = pneg %p56
        %p234 = pneg %p53
        %s235 = smul.u32 2, %s26
        %p236 = scmp.lt.s32.totalorder %s25, 1
        %s237 = scalar_select %p236, %s25, 1
        %p238 = scmp.lt.s32.totalorder %s235, 1
        %s239 = scalar_select %p238, %s235, 1
        %s240 = smul.addr %s237, 2
        %s241 = sadd.s32 %s239, %s240
        %s242 = scalar_lea.vmem %s1, %s241
        %p243 = pneg %p84
        %p244 = pneg %p81
        %p245 = pneg %p105
        %p246 = pneg %p102
        %p247 = pneg %p126
        %p248 = pneg %p123
        %p249 = pneg %p154
        %p250 = pneg %p151
        %s251 = sand.u32 %s141, 1
        %s252 = scalar_lea.sflag [#allocation4], %s251
        %s253 = sand.u32 %s141, 1
        %s254 = smul.addr %s253, 8
        %s255 = scalar_lea.vmem [#allocation5], %s254
        %s256 = smul.u32 2, %s26
        %s257 = smul.u32 2, %s26
        %p258 = scmp.lt.s32.totalorder %s25, 1
        %s259 = scalar_select %p258, %s25, 1
        %p260 = scmp.lt.s32.totalorder %s257, 1
        %s261 = scalar_select %p260, %s257, 1
        %s262 = smul.addr %s259, 2
        %s263 = sadd.s32 %s261, %s262
        %s264 = scalar_lea.vmem %s1, %s263
        %s265 = smul.u32 2, %s26
        %s266 = smul.u32 2, %s26
        %v267 = vld [vmem:[%s264] sm:$0x3]
        %v268 = vld [vmem:[%s2] sm:$0xf]
        %270 = vset.pattern.permute.xlu0 0
        %271 = vperm.xlu0 %270, %v268
        %v272 = vpop.permute.xlu0 %271
        %v275 = vlaneseq
        %v276 = vshrl.u32 %v275, 7
        %v277 = vsub.s32 0, %v276
        %v278 = vrot.slane %v267, %v277
        %v279 = vlaneseq
        %v280 = vshrl.u32 %v279, 7
        %v281 = vsub.s32 1, %v280
        %v282 = vrot.slane %v267, %v281
        %v285 = vmul.f32 %v272, %v278
        %v286 = vmul.f32 %v272, %v282
        %v287 = vld [vmem:[%s3] sm:$0xf]
        %289 = vset.pattern.permute.xlu0 0
        %290 = vperm.xlu0 %289, %v287
        %v291 = vpop.permute.xlu0 %290
        %v293 = vadd.f32 %v285, %v291
        %v294 = vadd.f32 %v286, %v291
        %v295 = vxor.u32 %v293, 2147483648
        %v296 = vxor.u32 %v294, 2147483648
        %v297 = vmul.f32 %v295, 1.442695
        %v298 = vpow.pop %v297
        %v299 = vmul.f32 %v296, 1.442695
        %v300 = vpow.pop %v299
        %v301 = vadd.f32 %v298, 1.0
        %v302 = vadd.f32 %v300, 1.0
        %v303 = vrcp.pop %v301
        %v304 = vmul.f32 1.0, %v303
        %v305 = vrcp.pop %v302
        %v306 = vmul.f32 1.0, %v305
        %v307 = vld [vmem:[%s223] sm:$0xff]
        %v310 = vcombine.low %v304, %v306
        %v312 = vmul.f32 %v307, %v310
        %313 = vst [vmem:[%s255] sm:$0xff] %v312
        %s314 = sand.u32 %s141, 1
        %s315 = scalar_lea.sflag [#allocation4], %s314
        %s316 = sand.u32 %s141, 1
        %s317 = smul.addr %s316, 8
        %s318 = scalar_lea.vmem [#allocation5], %s317
        // Predicated region
        $region41: #{tpu_custom_call.1} parent=35 // pred_check
          %p319 = pneg %p151
        $region42: #{tpu_custom_call.1} parent=35 // pred_check_branch
          %321 = sbr.rel (%p319) target = $region44
        $region43: #{tpu_custom_call.1} parent=35 // pred_region
          %s322 = smul.u32 2, %s26
          %s324 = ssub.s32 128, 128
          %325 = vsyncadd %s315, %s324
          %s326 = smul.addr %s25, 2
          %s327 = sadd.s32 %s322, %s326
          %s328 = smul.addr %s327, 64
          %s329 = scalar_lea.hbm %s4, %s328
          %s331 = sshll.u32 %s318, 4
          %s332 = int_to_ptr.vmem [resolvable:$true] %s331
          %334 = dma.vmem_to_hbm [thread:$0]  %s332, 128, %s329, %s315
        $region44: #{tpu_custom_call.1} parent=35 // pred_fallthru
          _
      $region36: #{tpu_custom_call.1} parent=5 // pred_fallthru
        _
      %p335 = scmp.le.s32.totalorder 2, %s16
      // Predicated region
      $region45: #{tpu_custom_call.1} parent=5 // pred_check
        %p336 = pneg %p335
      $region46: #{tpu_custom_call.1} parent=5 // pred_check_branch
        %338 = sbr.rel (%p336) target = $region48
      $region47: #{tpu_custom_call.1} parent=5 // pred_region
        %s339 = ssub.s32 %s16, 2
        // Predicated region
        $region49: #{tpu_custom_call.1} parent=47 // pred_check
          %p340 = pneg %p157
        $region50: #{tpu_custom_call.1} parent=47 // pred_check_branch
          %342 = sbr.rel (%p340) target = $region52
        $region51: #{tpu_custom_call.1} parent=47 // pred_region
          %s343 = sand.u32 %s142, 1
          %s344 = scalar_lea.sflag [#allocation4], %s343
          %s345 = sand.u32 %s142, 1
          %s346 = smul.addr %s345, 8
          %s347 = scalar_lea.vmem [#allocation5], %s346
          %348 = dma.done %s344, 128
        $region52: #{tpu_custom_call.1} parent=47 // pred_fallthru
          _
      $region48: #{tpu_custom_call.1} parent=5 // pred_fallthru
        _
    $region6: #{tpu_custom_call.1} parent=1 // loop_footer
      %s20 = sadd.s32 1, %s16
    $region7: #{tpu_custom_call.1} parent=1 // loop_footer_branch
      %15 = sbr.rel target = $region3
    $region8: #{tpu_custom_call.1} parent=1 // loop_exit
      _
    %349 = vsyncpa [#allocation3], 1
    %s350 = scalar_lea.sflag [#allocation3], 1
    %351 = vsyncpa %s350, 1
    %352 = vsyncpa [#allocation4], 1
    %s353 = scalar_lea.sflag [#allocation4], 1
    %354 = vsyncpa %s353, 1

</llo_original>
